<compile_context>
chip_gen: v7x
topology: tpu7x:2x2x1
jax: 0.10.0
libtpu: 0.0.40
codegen_flags: <defaults>
</compile_context>

<pallas_src>
import functools

import numpy as np
import jax
import jax.numpy as jnp
from jax.experimental import pallas as pl
from jax.experimental.pallas import tpu as pltpu


def _round_up(x, m):
    return (x + m - 1) // m * m


# ----------------------------------------------------------------------------
# Kernel: ReLU -> fused conv (one matmul) -> BatchNorm2d, all in VMEM
# ----------------------------------------------------------------------------
def _dilconv_bn_kernel(lhs_ref, w_ref, s_ref, gamma_ref, beta_ref, out_ref, *,
                       inv_m, eps):
    """lhs_ref   : (M, K) im2col'd zero-padded input rows (M = N*H_out)
       w_ref     : (K, L) fused depthwise*pointwise weights (L lane-padded)
       s_ref     : (L, L) channel spread matrix  J_{W_out} (x) I_{C_out}
       gamma_ref : (1, L) BN weight tiled over lanes (0 on pad lanes)
       beta_ref  : (1, L) BN bias   tiled over lanes (0 on pad lanes)
       out_ref   : (M, L)
    """
    xr = jnp.maximum(lhs_ref[...], 0.0)                       # ReLU (VPU)
    y = jnp.dot(xr, w_ref[...],                               # single MXU matmul
                preferred_element_type=jnp.float32)           # (M, L) f32

    # BatchNorm2d, y resident in VMEM.  S both reduces over the W_out lane
    # groups and broadcasts the per-channel result back to every lane.
    row_sum = jnp.sum(y, axis=0, keepdims=True)               # (1, L)
    mean_l = jnp.dot(row_sum, s_ref[...],
                     preferred_element_type=jnp.float32) * inv_m
    d = y - mean_l                                            # centered stats
    sq_sum = jnp.sum(d * d, axis=0, keepdims=True)            # (1, L)
    var_l = jnp.dot(sq_sum, s_ref[...],
                    preferred_element_type=jnp.float32) * inv_m
    scale_l = gamma_ref[...] * jax.lax.rsqrt(var_l + eps)     # EUP rsqrt
    shift_l = beta_ref[...] - mean_l * scale_l
    out_ref[...] = y * scale_l + shift_l                      # unmasked stores


# ----------------------------------------------------------------------------
# Wrapper
# ----------------------------------------------------------------------------
def dilconv_forward(x_nchw, w_dw, w_pw, gamma, beta, *, stride, padding,
                    dilation, eps=1e-5):
    """x_nchw: (N,C_in,H,W); w_dw: (C_in,1,KH,KW); w_pw: (C_out,C_in,1,1)."""
    n, c_in, h, w = x_nchw.shape
    c_out = w_pw.shape[0]
    kh, kw = int(w_dw.shape[2]), int(w_dw.shape[3])
    h_out = (h + 2 * padding - dilation * (kh - 1) - 1) // stride + 1
    w_out = (w + 2 * padding - dilation * (kw - 1) - 1) // stride + 1
    hp, wp = h + 2 * padding, w + 2 * padding
    h_span = (h_out - 1) * stride + 1

    kwc = wp * c_in                     # per-tap lane width
    k_real = kh * kwc                   # real contraction length
    k_pad = _round_up(k_real, 128)      # lane-dense lhs loads
    l_real = w_out * c_out              # real output lane width
    l_pad = _round_up(l_real, 128)      # unmasked output stores
    m_rows = n * h_out                  # matmul M: all images stacked

    # --- wrapper-side layout: NHWC, zero-pad, im2col the kh H taps ----------
    # (pad before ReLU is fine: ReLU(0)=0; ReLU commutes with the gather)
    x_nhwc = jnp.transpose(x_nchw, (0, 2, 3, 1)).astype(jnp.float32)
    xp = jnp.pad(x_nhwc, ((0, 0), (padding, padding), (padding, padding), (0, 0)))
    taps = []
    for ih in range(kh):
        t = jax.lax.slice(xp, (0, ih * dilation, 0, 0),
                          (n, ih * dilation + h_span, wp, c_in),
                          (1, stride, 1, 1))                  # (N,H_out,Wp,C_in)
        taps.append(t.reshape(n, h_out, kwc))
    lhs = jnp.concatenate(taps, axis=-1).reshape(m_rows, k_real)
    lhs = jnp.pad(lhs, ((0, 0), (0, k_pad - k_real)))

    # --- fused depthwise x pointwise weights (W taps + stride baked in) -----
    # W_big[ih*Wp*C_in + p*C_in + ci, ow*C_out + co]
    #   = sum_iw [p == ow*stride + iw*dilation] * wdw[ci,ih,iw] * wpw[co,ci]
    wdw_t = jnp.transpose(w_dw[:, 0, :, :], (1, 2, 0)).astype(jnp.float32)  # (kh,kw,C_in)
    wpw_t = jnp.transpose(w_pw[:, :, 0, 0], (1, 0)).astype(jnp.float32)     # (C_in,C_out)
    sel = np.zeros((kw, wp, w_out), np.float32)
    for iw in range(kw):
        for ow in range(w_out):
            sel[iw, ow * stride + iw * dilation, ow] = 1.0
    w_big = jnp.einsum('kpw,hkc,cd->hpcwd', jnp.asarray(sel), wdw_t, wpw_t,
                       precision=jax.lax.Precision.HIGHEST)
    w_big = w_big.reshape(k_real, l_real)
    w_big = jnp.pad(w_big, ((0, k_pad - k_real), (0, l_pad - l_real)))

    # --- channel spread matrix + lane-tiled BN affine params ----------------
    lane_ch = np.full((l_pad,), -1, np.int64)
    lane_ch[:l_real] = np.arange(l_real) % c_out
    s_mat = ((lane_ch[:, None] >= 0) &
             (lane_ch[:, None] == lane_ch[None, :])).astype(np.float32)
    gamma_l = jnp.pad(jnp.tile(gamma.astype(jnp.float32), w_out),
                      (0, l_pad - l_real)).reshape(1, l_pad)
    beta_l = jnp.pad(jnp.tile(beta.astype(jnp.float32), w_out),
                     (0, l_pad - l_real)).reshape(1, l_pad)

    m_count = n * h_out * w_out          # BN reduction count per channel

    flops = (2 * m_rows * k_pad * l_pad          # conv matmul
             + 2 * 2 * l_pad * l_pad             # two (1,L)x(L,L) stat matmuls
             + 8 * m_rows * l_pad)               # stats + affine elementwise
    bytes_accessed = 4 * (m_rows * k_pad + k_pad * l_pad + l_pad * l_pad
                          + 2 * l_pad + m_rows * l_pad)

    out_slab = pl.pallas_call(
        functools.partial(_dilconv_bn_kernel, inv_m=1.0 / m_count, eps=eps),
        out_shape=jax.ShapeDtypeStruct((m_rows, l_pad), jnp.float32),
        grid=(1,),
        in_specs=[pl.BlockSpec((m_rows, k_pad), lambda i: (0, 0)),
                  pl.BlockSpec((k_pad, l_pad), lambda i: (0, 0)),
                  pl.BlockSpec((l_pad, l_pad), lambda i: (0, 0)),
                  pl.BlockSpec((1, l_pad), lambda i: (0, 0)),
                  pl.BlockSpec((1, l_pad), lambda i: (0, 0))],
        out_specs=pl.BlockSpec((m_rows, l_pad), lambda i: (0, 0)),
        compiler_params=pltpu.CompilerParams(
            dimension_semantics=("arbitrary",)),
        cost_estimate=pl.CostEstimate(flops=flops, transcendentals=l_pad,
                                      bytes_accessed=bytes_accessed),
    )(lhs, w_big, jnp.asarray(s_mat), gamma_l, beta_l)

    out = out_slab[:, :l_real].reshape(n, h_out, w_out, c_out)
    return jnp.transpose(out, (0, 3, 1, 2))                    # back to NCHW


# ----------------------------------------------------------------------------
# Pure-JAX reference mirroring the PyTorch nn.Sequential
# ----------------------------------------------------------------------------
def _reference_forward(x_nchw, w_dw, w_pw, gamma, beta, *, stride, padding,
                       dilation, eps=1e-5):
    c_in = x_nchw.shape[1]
    x = jnp.maximum(x_nchw, 0.0)
    y = jax.lax.conv_general_dilated(
        x, w_dw, window_strides=(stride, stride),
        padding=((padding, padding), (padding, padding)),
        rhs_dilation=(dilation, dilation),
        dimension_numbers=("NCHW", "OIHW", "NCHW"),
        feature_group_count=c_in)
    z = jax.lax.conv_general_dilated(
        y, w_pw, window_strides=(1, 1), padding="VALID",
        dimension_numbers=("NCHW", "OIHW", "NCHW"))
    mean = jnp.mean(z, axis=(0, 2, 3), keepdims=True)
    var = jnp.mean((z - mean) ** 2, axis=(0, 2, 3), keepdims=True)
    zn = (z - mean) * jax.lax.rsqrt(var + eps)
    return zn * gamma.reshape(1, -1, 1, 1) + beta.reshape(1, -1, 1, 1)


if __name__ == "__main__":
    # DilConv(C_in=4, C_out=8, kernel_size=3, stride=1, padding=2, dilation=2)
    C_in, C_out = 4, 8
    kernel_size, stride, padding, dilation = 3, 1, 2, 2
    N, H, W = 2, 16, 16

    key = jax.random.PRNGKey(0)
    kx, kdw, kpw = jax.random.split(key, 3)

    x = jax.random.normal(kx, (N, C_in, H, W), dtype=jnp.float32)
    # PyTorch parameter shapes: depthwise (C_in,1,KH,KW), pointwise (C_out,C_in,1,1)
    w_dw = 0.1 * jax.random.normal(kdw, (C_in, 1, kernel_size, kernel_size),
                                   dtype=jnp.float32)
    w_pw = 0.1 * jax.random.normal(kpw, (C_out, C_in, 1, 1), dtype=jnp.float32)
    gamma = jnp.ones((C_out,), dtype=jnp.float32)   # BatchNorm affine weight
    beta = jnp.zeros((C_out,), dtype=jnp.float32)   # BatchNorm affine bias

    out = dilconv_forward(x, w_dw, w_pw, gamma, beta,
                          stride=stride, padding=padding, dilation=dilation)
    out = jax.block_until_ready(out)

    ref = _reference_forward(x, w_dw, w_pw, gamma, beta,
                             stride=stride, padding=padding, dilation=dilation)
    ref = jax.block_until_ready(ref)

    assert out.shape == (N, C_out, H, W), out.shape
    # slightly looser than 1e-4: single K=256 MXU dot changes summation order
    assert jnp.allclose(out, ref, atol=2e-4, rtol=2e-4), \
        float(jnp.max(jnp.abs(out - ref)))
    print("KERNEL_OK")
</pallas_src>

<mosaic_0001>
module attributes {stable_mosaic.version = 11 : i64} {
  func.func @_dilconv_bn_kernel(%arg0: i32, %arg1: memref<32x256xf32, #tpu.memory_space<vmem>>, %arg2: memref<256x128xf32, #tpu.memory_space<vmem>>, %arg3: memref<128x128xf32, #tpu.memory_space<vmem>>, %arg4: memref<1x128xf32, #tpu.memory_space<vmem>>, %arg5: memref<1x128xf32, #tpu.memory_space<vmem>>, %arg6: memref<32x128xf32, #tpu.memory_space<vmem>>) attributes {dimension_semantics = [#tpu.dimension_semantics<arbitrary>], iteration_bounds = array<i64: 1>, scalar_prefetch = 0 : i64, scratch_operands = 0 : i64, tpu.core_type = #tpu.core_type<tc>, window_params = [{pipeline_mode = #tpu.pipeline_mode<synchronous>, transform_indices = @transform_0, window_bounds = array<i64: 32, 256>}, {pipeline_mode = #tpu.pipeline_mode<synchronous>, transform_indices = @transform_1, window_bounds = array<i64: 256, 128>}, {pipeline_mode = #tpu.pipeline_mode<synchronous>, transform_indices = @transform_2, window_bounds = array<i64: 128, 128>}, {pipeline_mode = #tpu.pipeline_mode<synchronous>, transform_indices = @transform_3, window_bounds = array<i64: 1, 128>}, {pipeline_mode = #tpu.pipeline_mode<synchronous>, transform_indices = @transform_4, window_bounds = array<i64: 1, 128>}, {pipeline_mode = #tpu.pipeline_mode<synchronous>, transform_indices = @transform_5, window_bounds = array<i64: 32, 128>}]} {
    %c0 = arith.constant 0 : index
    %c0_0 = arith.constant 0 : index
    %0 = vector.load %arg1[%c0, %c0_0] : memref<32x256xf32, #tpu.memory_space<vmem>>, vector<32x256xf32>
    %cst = arith.constant 0.000000e+00 : f32
    %1 = vector.broadcast %cst : f32 to vector<32x256xf32>
    %2 = arith.maximumf %0, %1 : vector<32x256xf32>
    %c0_1 = arith.constant 0 : index
    %c0_2 = arith.constant 0 : index
    %3 = vector.load %arg2[%c0_1, %c0_2] : memref<256x128xf32, #tpu.memory_space<vmem>>, vector<256x128xf32>
    %cst_3 = arith.constant dense<0.000000e+00> : vector<32x128xf32>
    %4 = tpu.matmul %2, %3, %cst_3 {dimension_numbers = #tpu.dot_dimension_numbers<[1], [0], [0], [1], [0, 0, 1, 1], [], []>} : vector<32x256xf32>, vector<256x128xf32>, vector<32x128xf32> -> vector<32x128xf32>
    %cst_4 = arith.constant dense<0.000000e+00> : vector<128xf32>
    %5 = vector.multi_reduction <add>, %4, %cst_4 [0] : vector<32x128xf32> to vector<128xf32>
    %6 = vector.shape_cast %5 : vector<128xf32> to vector<1x128xf32>
    %c0_5 = arith.constant 0 : index
    %c0_6 = arith.constant 0 : index
    %7 = vector.load %arg3[%c0_5, %c0_6] : memref<128x128xf32, #tpu.memory_space<vmem>>, vector<128x128xf32>
    %cst_7 = arith.constant dense<0.000000e+00> : vector<1x128xf32>
    %8 = tpu.matmul %6, %7, %cst_7 {dimension_numbers = #tpu.dot_dimension_numbers<[1], [0], [0], [1], [0, 0, 1, 1], [], []>} : vector<1x128xf32>, vector<128x128xf32>, vector<1x128xf32> -> vector<1x128xf32>
    %cst_8 = arith.constant 0.001953125 : f32
    %9 = vector.broadcast %cst_8 : f32 to vector<1x128xf32>
    %10 = arith.mulf %8, %9 : vector<1x128xf32>
    %11 = vector.broadcast %10 : vector<1x128xf32> to vector<32x128xf32>
    %12 = arith.subf %4, %11 : vector<32x128xf32>
    %13 = arith.mulf %12, %12 : vector<32x128xf32>
    %cst_9 = arith.constant dense<0.000000e+00> : vector<128xf32>
    %14 = vector.multi_reduction <add>, %13, %cst_9 [0] : vector<32x128xf32> to vector<128xf32>
    %15 = vector.shape_cast %14 : vector<128xf32> to vector<1x128xf32>
    %c0_10 = arith.constant 0 : index
    %c0_11 = arith.constant 0 : index
    %16 = vector.load %arg3[%c0_10, %c0_11] : memref<128x128xf32, #tpu.memory_space<vmem>>, vector<128x128xf32>
    %cst_12 = arith.constant dense<0.000000e+00> : vector<1x128xf32>
    %17 = tpu.matmul %15, %16, %cst_12 {dimension_numbers = #tpu.dot_dimension_numbers<[1], [0], [0], [1], [0, 0, 1, 1], [], []>} : vector<1x128xf32>, vector<128x128xf32>, vector<1x128xf32> -> vector<1x128xf32>
    %cst_13 = arith.constant 0.001953125 : f32
    %18 = vector.broadcast %cst_13 : f32 to vector<1x128xf32>
    %19 = arith.mulf %17, %18 : vector<1x128xf32>
    %c0_14 = arith.constant 0 : index
    %c0_15 = arith.constant 0 : index
    %20 = vector.load %arg4[%c0_14, %c0_15] : memref<1x128xf32, #tpu.memory_space<vmem>>, vector<1x128xf32>
    %cst_16 = arith.constant 9.99999974E-6 : f32
    %21 = vector.broadcast %cst_16 : f32 to vector<1x128xf32>
    %22 = arith.addf %19, %21 : vector<1x128xf32>
    %23 = math.rsqrt %22 : vector<1x128xf32>
    %24 = arith.mulf %20, %23 : vector<1x128xf32>
    %c0_17 = arith.constant 0 : index
    %c0_18 = arith.constant 0 : index
    %25 = vector.load %arg5[%c0_17, %c0_18] : memref<1x128xf32, #tpu.memory_space<vmem>>, vector<1x128xf32>
    %26 = arith.mulf %10, %24 : vector<1x128xf32>
    %27 = arith.subf %25, %26 : vector<1x128xf32>
    %28 = vector.broadcast %24 : vector<1x128xf32> to vector<32x128xf32>
    %29 = arith.mulf %4, %28 : vector<32x128xf32>
    %30 = vector.broadcast %27 : vector<1x128xf32> to vector<32x128xf32>
    %31 = arith.addf %29, %30 : vector<32x128xf32>
    %c0_19 = arith.constant 0 : index
    %c0_20 = arith.constant 0 : index
    %32 = vector.load %arg6[%c0_19, %c0_20] : memref<32x128xf32, #tpu.memory_space<vmem>>, vector<32x128xf32>
    tpu.vector_store %arg6[%c0_19, %c0_20], %31 {strides = array<i32>} : memref<32x128xf32, #tpu.memory_space<vmem>>, vector<32x128xf32>,
    return
  }
  func.func @transform_0(%arg0: i32) -> (i32, i32) {
    %c0_i32 = arith.constant 0 : i32
    %c0_i32_0 = arith.constant 0 : i32
    %c0_i32_1 = arith.constant 0 : i32
    return %c0_i32, %c0_i32_0 : i32, i32
  }
  func.func @transform_1(%arg0: i32) -> (i32, i32) {
    %c0_i32 = arith.constant 0 : i32
    %c0_i32_0 = arith.constant 0 : i32
    %c0_i32_1 = arith.constant 0 : i32
    return %c0_i32, %c0_i32_0 : i32, i32
  }
  func.func @transform_2(%arg0: i32) -> (i32, i32) {
    %c0_i32 = arith.constant 0 : i32
    %c0_i32_0 = arith.constant 0 : i32
    %c0_i32_1 = arith.constant 0 : i32
    return %c0_i32, %c0_i32_0 : i32, i32
  }
  func.func @transform_3(%arg0: i32) -> (i32, i32) {
    %c0_i32 = arith.constant 0 : i32
    %c0_i32_0 = arith.constant 0 : i32
    %c0_i32_1 = arith.constant 0 : i32
    return %c0_i32, %c0_i32_0 : i32, i32
  }
  func.func @transform_4(%arg0: i32) -> (i32, i32) {
    %c0_i32 = arith.constant 0 : i32
    %c0_i32_0 = arith.constant 0 : i32
    %c0_i32_1 = arith.constant 0 : i32
    return %c0_i32, %c0_i32_0 : i32, i32
  }
  func.func @transform_5(%arg0: i32) -> (i32, i32) {
    %c0_i32 = arith.constant 0 : i32
    %c0_i32_0 = arith.constant 0 : i32
    %c0_i32_1 = arith.constant 0 : i32
    return %c0_i32, %c0_i32_0 : i32, i32
  }
}

</mosaic_0001>

<llo_original>
// kernel: tpu_custom_call.1
$region0: #{tpu_custom_call.1}
  #allocation0 [shape = 'u32[]', space=smem, size = 0x4, offset = 0x4, fixed_abs, tag = 'smem constant byte address 0x4 - core index']
  #allocation1 [shape = 'u32[144,128]{1,0:T(1,128)}', space=vmem, size = 0x12000, scoped, tag = 'internal scratch']
  %s0 = inlined_call_operand.hbm [shape: f32[32,256], index: 0, kind: input, shape index: {}]
  %s1 = inlined_call_operand.hbm [shape: f32[256,128], index: 1, kind: input, shape index: {}]
  %s2 = inlined_call_operand.hbm [shape: f32[128,128], index: 2, kind: input, shape index: {}]
  %s3 = inlined_call_operand.vmem [shape: f32[1,128], index: 3, kind: input, shape index: {}]
  %s4 = inlined_call_operand.vmem [shape: f32[1,128], index: 4, kind: input, shape index: {}]
  %s5 = inlined_call_operand.hbm [shape: f32[32,128], index: 5, kind: output, shape index: {}]
  %s6 = sld [smem:[#allocation0]]
  $region42: #{tpu_custom_call.1} parent=0
    _
  %s8 = ssub.s32 1, %s6
  %s9 = scalar_select 0, %s8, %s6
  $region1: #{tpu_custom_call.1} parent=0
    #allocation2 [shape = 'u8[32768]{0}', space=vmem, size = 0x8000, scoped, tag = 'input window, operand 0, single buffered']
    #allocation3 [shape = 's32[1]{0}', space=sflag, size = 0x4, scoped, tag = 'scoped memory for tpu_custom_call.1']
    #allocation4 [shape = 's32[1]{0}', space=sflag, size = 0x4, scoped, tag = 'scoped memory for tpu_custom_call.1']
    #allocation5 [shape = 'u8[131072]{0}', space=vmem, size = 0x20000, scoped, tag = 'input window, operand 1, single buffered']
    #allocation6 [shape = 's32[1]{0}', space=sflag, size = 0x4, scoped, tag = 'scoped memory for tpu_custom_call.1']
    #allocation7 [shape = 'u8[65536]{0}', space=vmem, size = 0x10000, scoped, tag = 'input window, operand 2, single buffered']
    #allocation8 [shape = 'u8[16384]{0}', space=vmem, size = 0x4000, scoped, tag = 'output window, operand 0, single buffered']
    %10 = vsyncpa [#allocation3], 0
    %11 = vsyncpa [#allocation6], 0
    %12 = vsyncpa [#allocation4], 0
    // Predicated region
    $region2: #{tpu_custom_call.1} parent=1 // pred_check
      _
    $region3: #{tpu_custom_call.1} parent=1 // pred_check_branch
      %14 = sbr.rel (0) target = $region5
    $region4: #{tpu_custom_call.1} parent=1 // pred_region
      %s16 = ssub.s32 1024, 1024
      %17 = vsyncadd [#allocation3], %s16
      %s18 = sshll.u32 [#allocation2], 4
      %s19 = int_to_ptr.vmem [resolvable:$true] %s18
      %24 = dma.hbm_to_vmem [thread:$0]  %s0, 1024, %s19, [#allocation3], 256, 256, 16
    $region5: #{tpu_custom_call.1} parent=1 // pred_fallthru
      _
    // Predicated region
    $region6: #{tpu_custom_call.1} parent=1 // pred_check
      _
    $region7: #{tpu_custom_call.1} parent=1 // pred_check_branch
      %26 = sbr.rel (0) target = $region9
    $region8: #{tpu_custom_call.1} parent=1 // pred_region
      %s28 = ssub.s32 4096, 4096
      %29 = vsyncadd [#allocation6], %s28
      %s30 = sshll.u32 [#allocation5], 4
      %s31 = int_to_ptr.vmem [resolvable:$true] %s30
      %36 = dma.hbm_to_vmem [thread:$0]  %s1, 4096, %s31, [#allocation6], 128, 128, 8
    $region9: #{tpu_custom_call.1} parent=1 // pred_fallthru
      _
    // Predicated region
    $region10: #{tpu_custom_call.1} parent=1 // pred_check
      _
    $region11: #{tpu_custom_call.1} parent=1 // pred_check_branch
      %38 = sbr.rel (0) target = $region13
    $region12: #{tpu_custom_call.1} parent=1 // pred_region
      %s40 = ssub.s32 2048, 2048
      %41 = vsyncadd [#allocation6], %s40
      %s42 = sshll.u32 [#allocation7], 4
      %s43 = int_to_ptr.vmem [resolvable:$true] %s42
      %48 = dma.hbm_to_vmem [thread:$0]  %s2, 2048, %s43, [#allocation6], 128, 128, 8
    $region13: #{tpu_custom_call.1} parent=1 // pred_fallthru
      _
    // Predicated region
    $region14: #{tpu_custom_call.1} parent=1 // pred_check
      _
    $region15: #{tpu_custom_call.1} parent=1 // pred_check_branch
      %50 = sbr.rel (0) target = $region17
    $region16: #{tpu_custom_call.1} parent=1 // pred_region
      _
    $region17: #{tpu_custom_call.1} parent=1 // pred_fallthru
      _
    // Predicated region
    $region18: #{tpu_custom_call.1} parent=1 // pred_check
      _
    $region19: #{tpu_custom_call.1} parent=1 // pred_check_branch
      %52 = sbr.rel (0) target = $region21
    $region20: #{tpu_custom_call.1} parent=1 // pred_region
      _
    $region21: #{tpu_custom_call.1} parent=1 // pred_fallthru
      _
    // Predicated region
    $region22: #{tpu_custom_call.1} parent=1 // pred_check
      _
    $region23: #{tpu_custom_call.1} parent=1 // pred_check_branch
      %54 = sbr.rel (0) target = $region25
    $region24: #{tpu_custom_call.1} parent=1 // pred_region
      %55 = dma.done [#allocation3], 1024
    $region25: #{tpu_custom_call.1} parent=1 // pred_fallthru
      _
    // Predicated region
    $region26: #{tpu_custom_call.1} parent=1 // pred_check
      _
    $region27: #{tpu_custom_call.1} parent=1 // pred_check_branch
      %57 = sbr.rel (0) target = $region29
    $region28: #{tpu_custom_call.1} parent=1 // pred_region
      %58 = dma.done [#allocation6], 4096
    $region29: #{tpu_custom_call.1} parent=1 // pred_fallthru
      _
    // Predicated region
    $region30: #{tpu_custom_call.1} parent=1 // pred_check
      _
    $region31: #{tpu_custom_call.1} parent=1 // pred_check_branch
      %60 = sbr.rel (0) target = $region33
    $region32: #{tpu_custom_call.1} parent=1 // pred_region
      %61 = dma.done [#allocation6], 2048
    $region33: #{tpu_custom_call.1} parent=1 // pred_fallthru
      _
    %v62 = vld [vmem:[#allocation2] sm:$0xff]
    %v63 = vld [vmem:[#allocation2 + $0x8] sm:$0xff]
    %v64 = vld [vmem:[#allocation2 + $0x10] sm:$0xff]
    %v65 = vld [vmem:[#allocation2 + $0x18] sm:$0xff]
    %v66 = vld [vmem:[#allocation2 + $0x20] sm:$0xff]
    %v67 = vld [vmem:[#allocation2 + $0x28] sm:$0xff]
    %v68 = vld [vmem:[#allocation2 + $0x30] sm:$0xff]
    %v69 = vld [vmem:[#allocation2 + $0x38] sm:$0xff]
    %v70 = vmax.f32 %v62, 0.0
    %v71 = vmax.f32 %v63, 0.0
    %v72 = vmax.f32 %v64, 0.0
    %v73 = vmax.f32 %v65, 0.0
    %v74 = vmax.f32 %v66, 0.0
    %v75 = vmax.f32 %v67, 0.0
    %v76 = vmax.f32 %v68, 0.0
    %v77 = vmax.f32 %v69, 0.0
    %v78 = vld [vmem:[#allocation5] sm:$0xff]
    %v79 = vld [vmem:[#allocation5 + $0x8] sm:$0xff]
    %v80 = vld [vmem:[#allocation5 + $0x10] sm:$0xff]
    %v81 = vld [vmem:[#allocation5 + $0x18] sm:$0xff]
    %v82 = vld [vmem:[#allocation5 + $0x20] sm:$0xff]
    %v83 = vld [vmem:[#allocation5 + $0x28] sm:$0xff]
    %v84 = vld [vmem:[#allocation5 + $0x30] sm:$0xff]
    %v85 = vld [vmem:[#allocation5 + $0x38] sm:$0xff]
    %v86 = vld [vmem:[#allocation5 + $0x40] sm:$0xff]
    %v87 = vld [vmem:[#allocation5 + $0x48] sm:$0xff]
    %v88 = vld [vmem:[#allocation5 + $0x50] sm:$0xff]
    %v89 = vld [vmem:[#allocation5 + $0x58] sm:$0xff]
    %v90 = vld [vmem:[#allocation5 + $0x60] sm:$0xff]
    %v91 = vld [vmem:[#allocation5 + $0x68] sm:$0xff]
    %v92 = vld [vmem:[#allocation5 + $0x70] sm:$0xff]
    %v93 = vld [vmem:[#allocation5 + $0x78] sm:$0xff]
    %v94 = vld [vmem:[#allocation5 + $0x80] sm:$0xff]
    %v95 = vld [vmem:[#allocation5 + $0x88] sm:$0xff]
    %v96 = vld [vmem:[#allocation5 + $0x90] sm:$0xff]
    %v97 = vld [vmem:[#allocation5 + $0x98] sm:$0xff]
    %v98 = vld [vmem:[#allocation5 + $0xa0] sm:$0xff]
    %v99 = vld [vmem:[#allocation5 + $0xa8] sm:$0xff]
    %v100 = vld [vmem:[#allocation5 + $0xb0] sm:$0xff]
    %v101 = vld [vmem:[#allocation5 + $0xb8] sm:$0xff]
    %v102 = vld [vmem:[#allocation5 + $0xc0] sm:$0xff]
    %v103 = vld [vmem:[#allocation5 + $0xc8] sm:$0xff]
    %v104 = vld [vmem:[#allocation5 + $0xd0] sm:$0xff]
    %v105 = vld [vmem:[#allocation5 + $0xd8] sm:$0xff]
    %v106 = vld [vmem:[#allocation5 + $0xe0] sm:$0xff]
    %v107 = vld [vmem:[#allocation5 + $0xe8] sm:$0xff]
    %v108 = vld [vmem:[#allocation5 + $0xf0] sm:$0xff]
    %v109 = vld [vmem:[#allocation5 + $0xf8] sm:$0xff]
    %110 = vmatprep.subr.mxu0 0.0
    %111 = vmatpush1.msra.mxu0 %v78
    %112 = vmatprep.subr.mxu0 0.0
    %113 = vmatpush1.msra.mxu0 %v79
    %114 = vmatprep.subr.mxu0 0.0
    %115 = vmatpush1.msra.mxu0 %v80
    %116 = vmatprep.subr.mxu0 0.0
    %117 = vmatpush1.msra.mxu0 %v81
    %118 = vmatprep.subr.mxu0 0.0
    %119 = vmatpush1.msra.mxu0 %v82
    %120 = vmatprep.subr.mxu0 0.0
    %121 = vmatpush1.msra.mxu0 %v83
    %122 = vmatprep.subr.mxu0 0.0
    %123 = vmatpush1.msra.mxu0 %v84
    %124 = vmatprep.subr.mxu0 0.0
    %125 = vmatpush1.msra.mxu0 %v85
    %126 = vmatprep.subr.mxu0 0.0
    %127 = vmatpush1.msra.mxu0 %v86
    %128 = vmatprep.subr.mxu0 0.0
    %129 = vmatpush1.msra.mxu0 %v87
    %130 = vmatprep.subr.mxu0 0.0
    %131 = vmatpush1.msra.mxu0 %v88
    %132 = vmatprep.subr.mxu0 0.0
    %133 = vmatpush1.msra.mxu0 %v89
    %134 = vmatprep.subr.mxu0 0.0
    %135 = vmatpush1.msra.mxu0 %v90
    %136 = vmatprep.subr.mxu0 0.0
    %137 = vmatpush1.msra.mxu0 %v91
    %138 = vmatprep.subr.mxu0 0.0
    %139 = vmatpush1.msra.mxu0 %v92
    %140 = vmatprep.subr.mxu0 0.0
    %141 = vmatpush1.msra.mxu0 %v93
    %142 = vmatprep.subr.mxu0 0.0
    %143 = vmatpush1.msra.mxu0 %v94
    %144 = vmatprep.subr.mxu0 0.0
    %145 = vmatpush1.msra.mxu0 %v95
    %146 = vmatprep.subr.mxu0 0.0
    %147 = vmatpush1.msra.mxu0 %v96
    %148 = vmatprep.subr.mxu0 0.0
    %149 = vmatpush1.msra.mxu0 %v97
    %150 = vmatprep.subr.mxu0 0.0
    %151 = vmatpush1.msra.mxu0 %v98
    %152 = vmatprep.subr.mxu0 0.0
    %153 = vmatpush1.msra.mxu0 %v99
    %154 = vmatprep.subr.mxu0 0.0
    %155 = vmatpush1.msra.mxu0 %v100
    %156 = vmatprep.subr.mxu0 0.0
    %157 = vmatpush1.msra.mxu0 %v101
    %158 = vmatprep.subr.mxu0 0.0
    %159 = vmatpush1.msra.mxu0 %v102
    %160 = vmatprep.subr.mxu0 0.0
    %161 = vmatpush1.msra.mxu0 %v103
    %162 = vmatprep.subr.mxu0 0.0
    %163 = vmatpush1.msra.mxu0 %v104
    %164 = vmatprep.subr.mxu0 0.0
    %165 = vmatpush1.msra.mxu0 %v105
    %166 = vmatprep.subr.mxu0 0.0
    %167 = vmatpush1.msra.mxu0 %v106
    %168 = vmatprep.subr.mxu0 0.0
    %169 = vmatpush1.msra.mxu0 %v107
    %170 = vmatprep.subr.mxu0 0.0
    %171 = vmatpush1.msra.mxu0 %v108
    %172 = vmatprep.subr.mxu0 0.0
    %173 = vmatpush1.msra.mxu0 %v109
    %174 = vmatprep.mubr.f32.mxu0 %v71
    %175 = vmatmul.mubr.f32.gmra.mrb[0].mxu0 %v70
    %v176 = vpop.f32.mrb[0].mxu0
    %v177 = vadd.f32 0.0, %v176
    %v178 = vpop.f32.mrb[0].mxu0
    %179 = vmatprep.mubr.f32.mxu0 %v73
    %180 = vmatmul.mubr.f32.gmra.mrb[0].mxu0 %v72
    %v181 = vpop.f32.mrb[0].mxu0
    %v182 = vadd.f32 0.0, %v181
    %v183 = vpop.f32.mrb[0].mxu0
    %184 = vmatprep.mubr.f32.mxu0 %v75
    %185 = vmatmul.mubr.f32.gmra.mrb[0].mxu0 %v74
    %v186 = vpop.f32.mrb[0].mxu0
    %v187 = vadd.f32 0.0, %v186
    %v188 = vpop.f32.mrb[0].mxu0
    %189 = vmatprep.mubr.f32.mxu0 %v77
    %190 = vmatmul.mubr.f32.gmra.mrb[0].mxu0 %v76
    %v191 = vpop.f32.mrb[0].mxu0
    %v192 = vadd.f32 0.0, %v191
    %v193 = vpop.f32.mrb[0].mxu0
    %194 = vdwg.mxu0
    %v195 = vadd.f32 %v177, %v182
    %v196 = vadd.f32 %v195, %v187
    %v197 = vadd.f32 %v196, %v192
    %v198 = vrot.slane %v197, 4
    %v199 = vadd.f32 %v197, %v198
    %v200 = vrot.slane %v199, 2
    %v201 = vadd.f32 %v199, %v200
    %v202 = vrot.slane %v201, 1
    %v203 = vadd.f32 %v201, %v202
    %v204 = vld [vmem:[#allocation7] sm:$0xff]
    %v205 = vld [vmem:[#allocation7 + $0x8] sm:$0xff]
    %v206 = vld [vmem:[#allocation7 + $0x10] sm:$0xff]
    %v207 = vld [vmem:[#allocation7 + $0x18] sm:$0xff]
    %v208 = vld [vmem:[#allocation7 + $0x20] sm:$0xff]
    %v209 = vld [vmem:[#allocation7 + $0x28] sm:$0xff]
    %v210 = vld [vmem:[#allocation7 + $0x30] sm:$0xff]
    %v211 = vld [vmem:[#allocation7 + $0x38] sm:$0xff]
    %v212 = vld [vmem:[#allocation7 + $0x40] sm:$0xff]
    %v213 = vld [vmem:[#allocation7 + $0x48] sm:$0xff]
    %v214 = vld [vmem:[#allocation7 + $0x50] sm:$0xff]
    %v215 = vld [vmem:[#allocation7 + $0x58] sm:$0xff]
    %v216 = vld [vmem:[#allocation7 + $0x60] sm:$0xff]
    %v217 = vld [vmem:[#allocation7 + $0x68] sm:$0xff]
    %v218 = vld [vmem:[#allocation7 + $0x70] sm:$0xff]
    %v219 = vld [vmem:[#allocation7 + $0x78] sm:$0xff]
    %220 = vmatprep.subr.mxu0 0.0
    %221 = vmatpush1.msra.mxu0 %v204
    %222 = vmatprep.subr.mxu0 0.0
    %223 = vmatpush1.msra.mxu0 %v205
    %224 = vmatprep.subr.mxu0 0.0
    %225 = vmatpush1.msra.mxu0 %v206
    %226 = vmatprep.subr.mxu0 0.0
    %227 = vmatpush1.msra.mxu0 %v207
    %228 = vmatprep.subr.mxu0 0.0
    %229 = vmatpush1.msra.mxu0 %v208
    %230 = vmatprep.subr.mxu0 0.0
    %231 = vmatpush1.msra.mxu0 %v209
    %232 = vmatprep.subr.mxu0 0.0
    %233 = vmatpush1.msra.mxu0 %v210
    %234 = vmatprep.subr.mxu0 0.0
    %235 = vmatpush1.msra.mxu0 %v211
    %236 = vmatprep.subr.mxu0 0.0
    %237 = vmatpush1.msra.mxu0 %v212
    %238 = vmatprep.subr.mxu0 0.0
    %239 = vmatpush1.msra.mxu0 %v213
    %240 = vmatprep.subr.mxu0 0.0
    %241 = vmatpush1.msra.mxu0 %v214
    %242 = vmatprep.subr.mxu0 0.0
    %243 = vmatpush1.msra.mxu0 %v215
    %244 = vmatprep.subr.mxu0 0.0
    %245 = vmatpush1.msra.mxu0 %v216
    %246 = vmatprep.subr.mxu0 0.0
    %247 = vmatpush1.msra.mxu0 %v217
    %248 = vmatprep.subr.mxu0 0.0
    %249 = vmatpush1.msra.mxu0 %v218
    %250 = vmatprep.subr.mxu0 0.0
    %251 = vmatpush1.msra.mxu0 %v219
    %252 = vmatprep.subr.mxu0 0.0
    %253 = vmatpush1.msra.mxu0 0.0
    %254 = vmatprep.subr.mxu0 0.0
    %255 = vmatpush1.msra.mxu0 0.0
    %256 = vmatprep.subr.mxu0 0.0
    %257 = vmatpush1.msra.mxu0 0.0
    %258 = vmatprep.subr.mxu0 0.0
    %259 = vmatpush1.msra.mxu0 0.0
    %260 = vmatprep.subr.mxu0 0.0
    %261 = vmatpush1.msra.mxu0 0.0
    %262 = vmatprep.subr.mxu0 0.0
    %263 = vmatpush1.msra.mxu0 0.0
    %264 = vmatprep.subr.mxu0 0.0
    %265 = vmatpush1.msra.mxu0 0.0
    %266 = vmatprep.subr.mxu0 0.0
    %267 = vmatpush1.msra.mxu0 0.0
    %268 = vmatprep.subr.mxu0 0.0
    %269 = vmatpush1.msra.mxu0 0.0
    %270 = vmatprep.subr.mxu0 0.0
    %271 = vmatpush1.msra.mxu0 0.0
    %272 = vmatprep.subr.mxu0 0.0
    %273 = vmatpush1.msra.mxu0 0.0
    %274 = vmatprep.subr.mxu0 0.0
    %275 = vmatpush1.msra.mxu0 0.0
    %276 = vmatprep.subr.mxu0 0.0
    %277 = vmatpush1.msra.mxu0 0.0
    %278 = vmatprep.subr.mxu0 0.0
    %279 = vmatpush1.msra.mxu0 0.0
    %280 = vmatprep.subr.mxu0 0.0
    %281 = vmatpush1.msra.mxu0 0.0
    %282 = vmatprep.subr.mxu0 0.0
    %283 = vmatpush1.msra.mxu0 0.0
    %284 = vmatprep.mubr.f32.mxu0 0.0
    %285 = vmatmul.mubr.f32.gmra.mrb[0].mxu0 %v203
    %v286 = vpop.f32.mrb[0].mxu0
    %v287 = vadd.f32 0.0, %v286
    %v288 = vpop.f32.mrb[0].mxu0
    %289 = vdwg.mxu0
    %v290 = vmul.f32 %v287, 0.001953125
    %v291 = vlaneseq
    %v292 = vshrl.u32 %v291, 7
    %v293 = vsub.s32 0, %v292
    %v294 = vrot.slane %v290, %v293
    %v295 = vsub.f32 %v177, %v294
    %v296 = vsub.f32 %v182, %v294
    %v297 = vsub.f32 %v187, %v294
    %v298 = vsub.f32 %v192, %v294
    %v299 = vmul.f32 %v295, %v295
    %v300 = vmul.f32 %v296, %v296
    %v301 = vmul.f32 %v297, %v297
    %v302 = vmul.f32 %v298, %v298
    %v303 = vadd.f32 %v299, %v300
    %v304 = vadd.f32 %v303, %v301
    %v305 = vadd.f32 %v304, %v302
    %v306 = vrot.slane %v305, 4
    %v307 = vadd.f32 %v305, %v306
    %v308 = vrot.slane %v307, 2
    %v309 = vadd.f32 %v307, %v308
    %v310 = vrot.slane %v309, 1
    %v311 = vadd.f32 %v309, %v310
    %312 = vmatprep.subr.mxu0 0.0
    %313 = vmatpush1.msra.mxu0 %v204
    %314 = vmatprep.subr.mxu0 0.0
    %315 = vmatpush1.msra.mxu0 %v205
    %316 = vmatprep.subr.mxu0 0.0
    %317 = vmatpush1.msra.mxu0 %v206
    %318 = vmatprep.subr.mxu0 0.0
    %319 = vmatpush1.msra.mxu0 %v207
    %320 = vmatprep.subr.mxu0 0.0
    %321 = vmatpush1.msra.mxu0 %v208
    %322 = vmatprep.subr.mxu0 0.0
    %323 = vmatpush1.msra.mxu0 %v209
    %324 = vmatprep.subr.mxu0 0.0
    %325 = vmatpush1.msra.mxu0 %v210
    %326 = vmatprep.subr.mxu0 0.0
    %327 = vmatpush1.msra.mxu0 %v211
    %328 = vmatprep.subr.mxu0 0.0
    %329 = vmatpush1.msra.mxu0 %v212
    %330 = vmatprep.subr.mxu0 0.0
    %331 = vmatpush1.msra.mxu0 %v213
    %332 = vmatprep.subr.mxu0 0.0
    %333 = vmatpush1.msra.mxu0 %v214
    %334 = vmatprep.subr.mxu0 0.0
    %335 = vmatpush1.msra.mxu0 %v215
    %336 = vmatprep.subr.mxu0 0.0
    %337 = vmatpush1.msra.mxu0 %v216
    %338 = vmatprep.subr.mxu0 0.0
    %339 = vmatpush1.msra.mxu0 %v217
    %340 = vmatprep.subr.mxu0 0.0
    %341 = vmatpush1.msra.mxu0 %v218
    %342 = vmatprep.subr.mxu0 0.0
    %343 = vmatpush1.msra.mxu0 %v219
    %344 = vmatprep.subr.mxu0 0.0
    %345 = vmatpush1.msra.mxu0 0.0
    %346 = vmatprep.subr.mxu0 0.0
    %347 = vmatpush1.msra.mxu0 0.0
    %348 = vmatprep.subr.mxu0 0.0
    %349 = vmatpush1.msra.mxu0 0.0
    %350 = vmatprep.subr.mxu0 0.0
    %351 = vmatpush1.msra.mxu0 0.0
    %352 = vmatprep.subr.mxu0 0.0
    %353 = vmatpush1.msra.mxu0 0.0
    %354 = vmatprep.subr.mxu0 0.0
    %355 = vmatpush1.msra.mxu0 0.0
    %356 = vmatprep.subr.mxu0 0.0
    %357 = vmatpush1.msra.mxu0 0.0
    %358 = vmatprep.subr.mxu0 0.0
    %359 = vmatpush1.msra.mxu0 0.0
    %360 = vmatprep.subr.mxu0 0.0
    %361 = vmatpush1.msra.mxu0 0.0
    %362 = vmatprep.subr.mxu0 0.0
    %363 = vmatpush1.msra.mxu0 0.0
    %364 = vmatprep.subr.mxu0 0.0
    %365 = vmatpush1.msra.mxu0 0.0
    %366 = vmatprep.subr.mxu0 0.0
    %367 = vmatpush1.msra.mxu0 0.0
    %368 = vmatprep.subr.mxu0 0.0
    %369 = vmatpush1.msra.mxu0 0.0
    %370 = vmatprep.subr.mxu0 0.0
    %371 = vmatpush1.msra.mxu0 0.0
    %372 = vmatprep.subr.mxu0 0.0
    %373 = vmatpush1.msra.mxu0 0.0
    %374 = vmatprep.subr.mxu0 0.0
    %375 = vmatpush1.msra.mxu0 0.0
    %376 = vmatprep.mubr.f32.mxu0 0.0
    %377 = vmatmul.mubr.f32.gmra.mrb[0].mxu0 %v311
    %v378 = vpop.f32.mrb[0].mxu0
    %v379 = vadd.f32 0.0, %v378
    %v380 = vpop.f32.mrb[0].mxu0
    %381 = vdwg.mxu0
    %v382 = vmul.f32 %v379, 0.001953125
    %v383 = vld [vmem:[%s3] sm:$0x1]
    %v384 = vadd.f32 %v382, 1e-05
    %v385 = vrsqrt.pop %v384
    %v386 = vmul.f32 %v383, %v385
    %v387 = vld [vmem:[%s4] sm:$0x1]
    %v388 = vmul.f32 %v290, %v386
    %v389 = vsub.f32 %v387, %v388
    %v391 = vlaneseq
    %v392 = vshrl.u32 %v391, 7
    %v393 = vsub.s32 0, %v392
    %v394 = vrot.slane %v386, %v393
    %v396 = vmul.f32 %v177, %v394
    %v397 = vmul.f32 %v182, %v394
    %v398 = vmul.f32 %v187, %v394
    %v399 = vmul.f32 %v192, %v394
    %v401 = vlaneseq
    %v402 = vshrl.u32 %v401, 7
    %v403 = vsub.s32 0, %v402
    %v404 = vrot.slane %v389, %v403
    %v406 = vadd.f32 %v396, %v404
    %v407 = vadd.f32 %v397, %v404
    %v408 = vadd.f32 %v398, %v404
    %v409 = vadd.f32 %v399, %v404
    %410 = vst [vmem:[#allocation8] sm:$0xff] %v406
    %411 = vst [vmem:[#allocation8 + $0x8] sm:$0xff] %v407
    %412 = vst [vmem:[#allocation8 + $0x10] sm:$0xff] %v408
    %413 = vst [vmem:[#allocation8 + $0x18] sm:$0xff] %v409
    // Predicated region
    $region34: #{tpu_custom_call.1} parent=1 // pred_check
      _
    $region35: #{tpu_custom_call.1} parent=1 // pred_check_branch
      %415 = sbr.rel (0) target = $region37
    $region36: #{tpu_custom_call.1} parent=1 // pred_region
      %s417 = ssub.s32 512, 512
      %418 = vsyncadd [#allocation4], %s417
      %s419 = sshll.u32 [#allocation8], 4
      %s420 = int_to_ptr.vmem [resolvable:$true] %s419
      %425 = dma.vmem_to_hbm [thread:$0]  %s420, 512, %s5, [#allocation4], 128, 128, 8
    $region37: #{tpu_custom_call.1} parent=1 // pred_fallthru
      _
    // Predicated region
    $region38: #{tpu_custom_call.1} parent=1 // pred_check
      _
    $region39: #{tpu_custom_call.1} parent=1 // pred_check_branch
      %427 = sbr.rel (0) target = $region41
    $region40: #{tpu_custom_call.1} parent=1 // pred_region
      %428 = dma.done [#allocation4], 512
    $region41: #{tpu_custom_call.1} parent=1 // pred_fallthru
      _
    %429 = vsyncpa [#allocation3], 1
    %430 = vsyncpa [#allocation6], 1
    %431 = vsyncpa [#allocation4], 1

</llo_original>
